<compile_context>
chip_gen: v6e
topology: v6e:2x2x1
jax: 0.10.0
libtpu: 0.0.40
codegen_flags: <defaults>
</compile_context>

<pallas_src>
import jax
import jax.numpy as jnp
from jax import lax
from jax.experimental import pallas as pl
from jax.experimental.pallas import tpu as pltpu


def bilinear_contract_kernel(p_ref, w_ref, noise_ref, o_ref):
    """One (o, k) grid step: accumulate P_tile(bf16) @ W2_tile(bf16) into f32 o_ref."""
    k = pl.program_id(1)

    @pl.when(k == 0)
    def _():
        o_ref[...] = noise_ref[...]          # effect starts at the (f32) noise term

    # bf16 x bf16 -> f32 on the MXU; accumulate in the resident f32 output block.
    o_ref[...] += jnp.dot(p_ref[...], w_ref[...], preferred_element_type=jnp.float32)


def standardize_kernel(x_ref, o_ref):
    """Global (x - mean) / std with torch's default unbiased std (ddof=1)."""
    x = x_ref[...]
    n = x.size
    mean = jnp.sum(x) / n
    centered = x - mean
    var = jnp.sum(centered * centered) / (n - 1)
    o_ref[...] = centered * lax.rsqrt(var)   # rsqrt -> EUP slot, mul on VPU


def _pick_tiles(D):
    DD = D * D
    # Output-feature tile (lane axis): full D when small, else 256/128-wide aligned tiles.
    if D <= 256:
        TO = D
    elif D % 256 == 0:
        TO = 256
    elif D % 128 == 0:
        TO = 128
    else:
        TO = D
    # K tile over the flattened (i, j) contraction axis: keep a W2 tile <= ~8 MiB in bf16
    # so the double-buffered stream stays well inside v7x's 64 MiB physical VMEM.
    w2_tile_budget = 8 * 1024 * 1024
    if DD * TO * 2 <= w2_tile_budget or D % 128 != 0:
        TK = DD                                            # single K step
    else:
        c = max(1, (w2_tile_budget // (TO * 2)) // D)      # whole multiples of D rows
        while D % c != 0:                                  # so TK = c*D divides D*D
            c -= 1
        TK = c * D
    return TO, TK


def bilinear_fun(cause, weight, noise):
    N, D = cause.shape
    assert weight.shape == (D, D, D), "indim must equal outdim (same tensor fed to both slots)"
    assert noise.shape == (N, D)
    DD = D * D

    # Wrapper-side layout/precision plumbing (bandwidth-bound kernel => bf16 operands):
    #   P[n, i*D + j]  = cause[n, i] * cause[n, j]   (N, D*D)   bf16
    #   W2[i*D + j, o] = W[o, i, j]                  (D*D, D)   bf16, lane-dense O
    p = (cause[:, :, None] * cause[:, None, :]).reshape(N, DD).astype(jnp.bfloat16)
    w2 = jnp.transpose(weight, (1, 2, 0)).reshape(DD, D).astype(jnp.bfloat16)
    noise = noise.astype(jnp.float32)

    TO, TK = _pick_tiles(D)
    assert D % TO == 0 and DD % TK == 0
    grid = (D // TO, DD // TK)                 # reduction (K) axis last

    # Explicit VMEM budget: double-buffered W2 / P / noise / output tiles, plus headroom.
    tile_bytes = (2 * TK * TO * 2      # W2 double buffer (bf16)
                  + 2 * N * TK * 2     # P double buffer (bf16)
                  + 2 * N * TO * 4     # noise double buffer (f32)
                  + 2 * N * TO * 4)    # output double buffer (f32)
    vmem_limit = int(min(max(2 * tile_bytes, 16 * 1024 * 1024), 64 * 1024 * 1024))

    effect = pl.pallas_call(
        bilinear_contract_kernel,
        out_shape=jax.ShapeDtypeStruct((N, D), jnp.float32),
        grid_spec=pltpu.PrefetchScalarGridSpec(
            num_scalar_prefetch=0,
            grid=grid,
            in_specs=[
                pl.BlockSpec((N, TK), lambda o, k: (0, k)),    # P: streamed over K
                pl.BlockSpec((TK, TO), lambda o, k: (k, o)),   # W2: streamed over (K, O)
                pl.BlockSpec((N, TO), lambda o, k: (0, o)),    # noise: per-O tile
            ],
            out_specs=pl.BlockSpec((N, TO), lambda o, k: (0, o)),  # f32 accumulator block
        ),
        compiler_params=pltpu.CompilerParams(
            # O blocks are independent -> "parallel" (v7x megacore); K is the contraction.
            dimension_semantics=("parallel", "arbitrary"),
            vmem_limit_bytes=vmem_limit,
        ),
    )(p, w2, noise)

    # Tiny second pass: global standardization kept outside the main kernel so its O axis
    # can be parallel.  Whole (N, D) effect fits a single VMEM block at these sizes.
    return pl.pallas_call(
        standardize_kernel,
        out_shape=jax.ShapeDtypeStruct((N, D), jnp.float32),
    )(effect)


if __name__ == "__main__":
    N, D = 8, 32  # batch, indim == outdim

    key = jax.random.PRNGKey(0)
    k_cause, k_w, k_scale, k_noise, k_sign = jax.random.split(key, 5)

    cause = jax.random.normal(k_cause, (N, D), dtype=jnp.float32)

    # nn.Bilinear(outdim, indim, indim, bias=False): weight (indim, outdim, indim) = (D, D, D),
    # init uniform(-1/sqrt(in1_features), 1/sqrt(in1_features)); deterministic here.
    bound = 1.0 / float(D) ** 0.5
    weight = jax.random.uniform(k_w, (D, D, D), dtype=jnp.float32,
                                minval=-bound, maxval=bound)

    # normal_noise(N, outdim, 1): rand() * randn(N, D) + random choice of (+1, -1)
    scale = jax.random.uniform(k_scale, (), dtype=jnp.float32)
    sign = jnp.where(jax.random.bernoulli(k_sign), 1.0, -1.0).astype(jnp.float32)
    noise = scale * jax.random.normal(k_noise, (N, D), dtype=jnp.float32) + sign

    out = jax.block_until_ready(bilinear_fun(cause, weight, noise))

    # pure-JAX f32 reference for correctness (tolerance loosened for bf16 MXU operands)
    eff = jnp.einsum("ni,oij,nj->no", cause, weight, cause,
                     precision=lax.Precision.HIGHEST) + noise
    mean = eff.mean()
    std = jnp.sqrt(jnp.sum((eff - mean) ** 2) / (eff.size - 1))
    ref = (eff - mean) / std
    assert out.shape == ref.shape
    assert jnp.allclose(out, ref, atol=2e-2, rtol=2e-2), "Pallas output mismatch vs reference"

    print("KERNEL_OK")
</pallas_src>

<mosaic_0001>
module attributes {stable_mosaic.version = 11 : i64} {
  func.func @bilinear_contract_kernel(%arg0: i32, %arg1: i32, %arg2: memref<8x1024xbf16, #tpu.memory_space<vmem>>, %arg3: memref<1024x32xbf16, #tpu.memory_space<vmem>>, %arg4: memref<8x32xf32, #tpu.memory_space<vmem>>, %arg5: memref<8x32xf32, #tpu.memory_space<vmem>>) attributes {dimension_semantics = [#tpu.dimension_semantics<parallel>, #tpu.dimension_semantics<arbitrary>], iteration_bounds = array<i64: 1, 1>, scalar_prefetch = 0 : i64, scratch_operands = 0 : i64, tpu.core_type = #tpu.core_type<tc>, window_params = [{transform_indices = @transform_0, window_bounds = array<i64: 8, 1024>}, {transform_indices = @transform_1, window_bounds = array<i64: 1024, 32>}, {transform_indices = @transform_2, window_bounds = array<i64: 8, 32>}, {transform_indices = @transform_3, window_bounds = array<i64: 8, 32>}]} {
    %c0_i32 = arith.constant 0 : i32
    %0 = arith.cmpi eq, %arg1, %c0_i32 : i32
    %1 = arith.extui %0 : i1 to i32
    %c0_i32_0 = arith.constant 0 : i32
    %2 = arith.cmpi ne, %1, %c0_i32_0 : i32
    scf.if %2 {
      %c0_8 = arith.constant 0 : index
      %c0_9 = arith.constant 0 : index
      %9 = vector.load %arg4[%c0_8, %c0_9] : memref<8x32xf32, #tpu.memory_space<vmem>>, vector<8x32xf32>
      %c0_10 = arith.constant 0 : index
      %c0_11 = arith.constant 0 : index
      %10 = vector.load %arg5[%c0_10, %c0_11] : memref<8x32xf32, #tpu.memory_space<vmem>>, vector<8x32xf32>
      tpu.vector_store %arg5[%c0_10, %c0_11], %9 {strides = array<i32>} : memref<8x32xf32, #tpu.memory_space<vmem>>, vector<8x32xf32>,
    } else {
    }
    %c0 = arith.constant 0 : index
    %c0_1 = arith.constant 0 : index
    %3 = vector.load %arg5[%c0, %c0_1] : memref<8x32xf32, #tpu.memory_space<vmem>>, vector<8x32xf32>
    %c0_2 = arith.constant 0 : index
    %c0_3 = arith.constant 0 : index
    %4 = vector.load %arg2[%c0_2, %c0_3] : memref<8x1024xbf16, #tpu.memory_space<vmem>>, vector<8x1024xbf16>
    %c0_4 = arith.constant 0 : index
    %c0_5 = arith.constant 0 : index
    %5 = vector.load %arg3[%c0_4, %c0_5] : memref<1024x32xbf16, #tpu.memory_space<vmem>>, vector<1024x32xbf16>
    %cst = arith.constant dense<0.000000e+00> : vector<8x32xf32>
    %6 = tpu.matmul %4, %5, %cst {dimension_numbers = #tpu.dot_dimension_numbers<[1], [0], [0], [1], [0, 0, 1, 1], [], []>} : vector<8x1024xbf16>, vector<1024x32xbf16>, vector<8x32xf32> -> vector<8x32xf32>
    %7 = arith.addf %3, %6 : vector<8x32xf32>
    %c0_6 = arith.constant 0 : index
    %c0_7 = arith.constant 0 : index
    %8 = vector.load %arg5[%c0_6, %c0_7] : memref<8x32xf32, #tpu.memory_space<vmem>>, vector<8x32xf32>
    tpu.vector_store %arg5[%c0_6, %c0_7], %7 {strides = array<i32>} : memref<8x32xf32, #tpu.memory_space<vmem>>, vector<8x32xf32>,
    return
  }
  func.func @transform_0(%arg0: i32, %arg1: i32) -> (i32, i32) {
    %c0_i32 = arith.constant 0 : i32
    %c0_i32_0 = arith.constant 0 : i32
    return %c0_i32, %arg1 : i32, i32
  }
  func.func @transform_1(%arg0: i32, %arg1: i32) -> (i32, i32) {
    %c0_i32 = arith.constant 0 : i32
    return %arg1, %arg0 : i32, i32
  }
  func.func @transform_2(%arg0: i32, %arg1: i32) -> (i32, i32) {
    %c0_i32 = arith.constant 0 : i32
    %c0_i32_0 = arith.constant 0 : i32
    return %c0_i32, %arg0 : i32, i32
  }
  func.func @transform_3(%arg0: i32, %arg1: i32) -> (i32, i32) {
    %c0_i32 = arith.constant 0 : i32
    %c0_i32_0 = arith.constant 0 : i32
    return %c0_i32, %arg0 : i32, i32
  }
}

</mosaic_0001>

<llo_original>
// kernel: tpu_custom_call.1
$region0: #{tpu_custom_call.1}
  #allocation0 [shape = 'u32[]', space=smem, size = 0x4, offset = 0x4, fixed_abs, tag = 'smem constant byte address 0x4 - core index']
  #allocation1 [shape = 'u32[144,128]{1,0:T(1,128)}', space=vmem, size = 0x12000, scoped, tag = 'internal scratch']
  %s0 = inlined_call_operand.vmem [shape: bf16[8,1024], index: 0, kind: input, shape index: {}]
  %s1 = inlined_call_operand.vmem [shape: bf16[1024,32], index: 1, kind: input, shape index: {}]
  %s2 = inlined_call_operand.vmem [shape: f32[8,32], index: 2, kind: input, shape index: {}]
  %s3 = inlined_call_operand.hbm [shape: f32[8,32], index: 3, kind: output, shape index: {}]
  %s4 = sld [smem:[#allocation0]]
  $region26: #{tpu_custom_call.1} parent=0
    _
  %s6 = ssub.s32 1, %s4
  %s7 = scalar_select 0, %s6, %s4
  $region1: #{tpu_custom_call.1} parent=0
    #allocation2 [shape = 'u8[4096]{0}', space=vmem, size = 0x1000, scoped, tag = 'output window, operand 0, single buffered']
    #allocation3 [shape = 's32[1]{0}', space=sflag, size = 0x4, scoped, tag = 'scoped memory for tpu_custom_call.1']
    %8 = vsyncpa [#allocation3], 0
    // Predicated region
    $region2: #{tpu_custom_call.1} parent=1 // pred_check
      _
    $region3: #{tpu_custom_call.1} parent=1 // pred_check_branch
      %10 = sbr.rel (0) target = $region5
    $region4: #{tpu_custom_call.1} parent=1 // pred_region
      _
    $region5: #{tpu_custom_call.1} parent=1 // pred_fallthru
      _
    // Predicated region
    $region6: #{tpu_custom_call.1} parent=1 // pred_check
      _
    $region7: #{tpu_custom_call.1} parent=1 // pred_check_branch
      %12 = sbr.rel (0) target = $region9
    $region8: #{tpu_custom_call.1} parent=1 // pred_region
      _
    $region9: #{tpu_custom_call.1} parent=1 // pred_fallthru
      _
    // Predicated region
    $region10: #{tpu_custom_call.1} parent=1 // pred_check
      _
    $region11: #{tpu_custom_call.1} parent=1 // pred_check_branch
      %14 = sbr.rel (0) target = $region13
    $region12: #{tpu_custom_call.1} parent=1 // pred_region
      _
    $region13: #{tpu_custom_call.1} parent=1 // pred_fallthru
      _
    %p16 = scmp.eq.s32.totalorder 0, 0
    // Predicated region
    $region14: #{tpu_custom_call.1} parent=1 // pred_check
      %p17 = pneg %p16
    $region15: #{tpu_custom_call.1} parent=1 // pred_check_branch
      %19 = sbr.rel (%p17) target = $region17
    $region16: #{tpu_custom_call.1} parent=1 // pred_region
      %v20 = vld [vmem:[%s2] sm:$0xff]
      %vm21 = vcmask 261120
      %22 = vst.msk [vmem:[#allocation2] sm:$0xff] %vm21, %v20
    $region17: #{tpu_custom_call.1} parent=1 // pred_fallthru
      _
    %v23 = vld [vmem:[#allocation2] sm:$0xff]
    %v24 = vld [vmem:[%s0] sm:$0xff]
    %v25 = vld [vmem:[%s0 + $0x8] sm:$0xff]
    %v26 = vld [vmem:[%s0 + $0x10] sm:$0xff]
    %v27 = vld [vmem:[%s0 + $0x18] sm:$0xff]
    %v28 = vld [vmem:[%s1] sm:$0xf]
    %v29 = vld [vmem:[%s1 + $0x4] sm:$0xf]
    %v30 = vld [vmem:[%s1 + $0x8] sm:$0xf]
    %v31 = vld [vmem:[%s1 + $0xc] sm:$0xf]
    %v32 = vld [vmem:[%s1 + $0x10] sm:$0xf]
    %v33 = vld [vmem:[%s1 + $0x14] sm:$0xf]
    %v34 = vld [vmem:[%s1 + $0x18] sm:$0xf]
    %v35 = vld [vmem:[%s1 + $0x1c] sm:$0xf]
    %v36 = vld [vmem:[%s1 + $0x20] sm:$0xf]
    %v37 = vld [vmem:[%s1 + $0x24] sm:$0xf]
    %v38 = vld [vmem:[%s1 + $0x28] sm:$0xf]
    %v39 = vld [vmem:[%s1 + $0x2c] sm:$0xf]
    %v40 = vld [vmem:[%s1 + $0x30] sm:$0xf]
    %v41 = vld [vmem:[%s1 + $0x34] sm:$0xf]
    %v42 = vld [vmem:[%s1 + $0x38] sm:$0xf]
    %v43 = vld [vmem:[%s1 + $0x3c] sm:$0xf]
    %v44 = vld [vmem:[%s1 + $0x40] sm:$0xf]
    %v45 = vld [vmem:[%s1 + $0x44] sm:$0xf]
    %v46 = vld [vmem:[%s1 + $0x48] sm:$0xf]
    %v47 = vld [vmem:[%s1 + $0x4c] sm:$0xf]
    %v48 = vld [vmem:[%s1 + $0x50] sm:$0xf]
    %v49 = vld [vmem:[%s1 + $0x54] sm:$0xf]
    %v50 = vld [vmem:[%s1 + $0x58] sm:$0xf]
    %v51 = vld [vmem:[%s1 + $0x5c] sm:$0xf]
    %v52 = vld [vmem:[%s1 + $0x60] sm:$0xf]
    %v53 = vld [vmem:[%s1 + $0x64] sm:$0xf]
    %v54 = vld [vmem:[%s1 + $0x68] sm:$0xf]
    %v55 = vld [vmem:[%s1 + $0x6c] sm:$0xf]
    %v56 = vld [vmem:[%s1 + $0x70] sm:$0xf]
    %v57 = vld [vmem:[%s1 + $0x74] sm:$0xf]
    %v58 = vld [vmem:[%s1 + $0x78] sm:$0xf]
    %v59 = vld [vmem:[%s1 + $0x7c] sm:$0xf]
    %v60 = vld [vmem:[%s1 + $0x80] sm:$0xf]
    %v61 = vld [vmem:[%s1 + $0x84] sm:$0xf]
    %v62 = vld [vmem:[%s1 + $0x88] sm:$0xf]
    %v63 = vld [vmem:[%s1 + $0x8c] sm:$0xf]
    %v64 = vld [vmem:[%s1 + $0x90] sm:$0xf]
    %v65 = vld [vmem:[%s1 + $0x94] sm:$0xf]
    %v66 = vld [vmem:[%s1 + $0x98] sm:$0xf]
    %v67 = vld [vmem:[%s1 + $0x9c] sm:$0xf]
    %v68 = vld [vmem:[%s1 + $0xa0] sm:$0xf]
    %v69 = vld [vmem:[%s1 + $0xa4] sm:$0xf]
    %v70 = vld [vmem:[%s1 + $0xa8] sm:$0xf]
    %v71 = vld [vmem:[%s1 + $0xac] sm:$0xf]
    %v72 = vld [vmem:[%s1 + $0xb0] sm:$0xf]
    %v73 = vld [vmem:[%s1 + $0xb4] sm:$0xf]
    %v74 = vld [vmem:[%s1 + $0xb8] sm:$0xf]
    %v75 = vld [vmem:[%s1 + $0xbc] sm:$0xf]
    %v76 = vld [vmem:[%s1 + $0xc0] sm:$0xf]
    %v77 = vld [vmem:[%s1 + $0xc4] sm:$0xf]
    %v78 = vld [vmem:[%s1 + $0xc8] sm:$0xf]
    %v79 = vld [vmem:[%s1 + $0xcc] sm:$0xf]
    %v80 = vld [vmem:[%s1 + $0xd0] sm:$0xf]
    %v81 = vld [vmem:[%s1 + $0xd4] sm:$0xf]
    %v82 = vld [vmem:[%s1 + $0xd8] sm:$0xf]
    %v83 = vld [vmem:[%s1 + $0xdc] sm:$0xf]
    %v84 = vld [vmem:[%s1 + $0xe0] sm:$0xf]
    %v85 = vld [vmem:[%s1 + $0xe4] sm:$0xf]
    %v86 = vld [vmem:[%s1 + $0xe8] sm:$0xf]
    %v87 = vld [vmem:[%s1 + $0xec] sm:$0xf]
    %v88 = vld [vmem:[%s1 + $0xf0] sm:$0xf]
    %v89 = vld [vmem:[%s1 + $0xf4] sm:$0xf]
    %v90 = vld [vmem:[%s1 + $0xf8] sm:$0xf]
    %v91 = vld [vmem:[%s1 + $0xfc] sm:$0xf]
    %v92 = vld [vmem:[%s1 + $0x100] sm:$0xf]
    %v93 = vld [vmem:[%s1 + $0x104] sm:$0xf]
    %v94 = vld [vmem:[%s1 + $0x108] sm:$0xf]
    %v95 = vld [vmem:[%s1 + $0x10c] sm:$0xf]
    %v96 = vld [vmem:[%s1 + $0x110] sm:$0xf]
    %v97 = vld [vmem:[%s1 + $0x114] sm:$0xf]
    %v98 = vld [vmem:[%s1 + $0x118] sm:$0xf]
    %v99 = vld [vmem:[%s1 + $0x11c] sm:$0xf]
    %v100 = vld [vmem:[%s1 + $0x120] sm:$0xf]
    %v101 = vld [vmem:[%s1 + $0x124] sm:$0xf]
    %v102 = vld [vmem:[%s1 + $0x128] sm:$0xf]
    %v103 = vld [vmem:[%s1 + $0x12c] sm:$0xf]
    %v104 = vld [vmem:[%s1 + $0x130] sm:$0xf]
    %v105 = vld [vmem:[%s1 + $0x134] sm:$0xf]
    %v106 = vld [vmem:[%s1 + $0x138] sm:$0xf]
    %v107 = vld [vmem:[%s1 + $0x13c] sm:$0xf]
    %v108 = vld [vmem:[%s1 + $0x140] sm:$0xf]
    %v109 = vld [vmem:[%s1 + $0x144] sm:$0xf]
    %v110 = vld [vmem:[%s1 + $0x148] sm:$0xf]
    %v111 = vld [vmem:[%s1 + $0x14c] sm:$0xf]
    %v112 = vld [vmem:[%s1 + $0x150] sm:$0xf]
    %v113 = vld [vmem:[%s1 + $0x154] sm:$0xf]
    %v114 = vld [vmem:[%s1 + $0x158] sm:$0xf]
    %v115 = vld [vmem:[%s1 + $0x15c] sm:$0xf]
    %v116 = vld [vmem:[%s1 + $0x160] sm:$0xf]
    %v117 = vld [vmem:[%s1 + $0x164] sm:$0xf]
    %v118 = vld [vmem:[%s1 + $0x168] sm:$0xf]
    %v119 = vld [vmem:[%s1 + $0x16c] sm:$0xf]
    %v120 = vld [vmem:[%s1 + $0x170] sm:$0xf]
    %v121 = vld [vmem:[%s1 + $0x174] sm:$0xf]
    %v122 = vld [vmem:[%s1 + $0x178] sm:$0xf]
    %v123 = vld [vmem:[%s1 + $0x17c] sm:$0xf]
    %v124 = vld [vmem:[%s1 + $0x180] sm:$0xf]
    %v125 = vld [vmem:[%s1 + $0x184] sm:$0xf]
    %v126 = vld [vmem:[%s1 + $0x188] sm:$0xf]
    %v127 = vld [vmem:[%s1 + $0x18c] sm:$0xf]
    %v128 = vld [vmem:[%s1 + $0x190] sm:$0xf]
    %v129 = vld [vmem:[%s1 + $0x194] sm:$0xf]
    %v130 = vld [vmem:[%s1 + $0x198] sm:$0xf]
    %v131 = vld [vmem:[%s1 + $0x19c] sm:$0xf]
    %v132 = vld [vmem:[%s1 + $0x1a0] sm:$0xf]
    %v133 = vld [vmem:[%s1 + $0x1a4] sm:$0xf]
    %v134 = vld [vmem:[%s1 + $0x1a8] sm:$0xf]
    %v135 = vld [vmem:[%s1 + $0x1ac] sm:$0xf]
    %v136 = vld [vmem:[%s1 + $0x1b0] sm:$0xf]
    %v137 = vld [vmem:[%s1 + $0x1b4] sm:$0xf]
    %v138 = vld [vmem:[%s1 + $0x1b8] sm:$0xf]
    %v139 = vld [vmem:[%s1 + $0x1bc] sm:$0xf]
    %v140 = vld [vmem:[%s1 + $0x1c0] sm:$0xf]
    %v141 = vld [vmem:[%s1 + $0x1c4] sm:$0xf]
    %v142 = vld [vmem:[%s1 + $0x1c8] sm:$0xf]
    %v143 = vld [vmem:[%s1 + $0x1cc] sm:$0xf]
    %v144 = vld [vmem:[%s1 + $0x1d0] sm:$0xf]
    %v145 = vld [vmem:[%s1 + $0x1d4] sm:$0xf]
    %v146 = vld [vmem:[%s1 + $0x1d8] sm:$0xf]
    %v147 = vld [vmem:[%s1 + $0x1dc] sm:$0xf]
    %v148 = vld [vmem:[%s1 + $0x1e0] sm:$0xf]
    %v149 = vld [vmem:[%s1 + $0x1e4] sm:$0xf]
    %v150 = vld [vmem:[%s1 + $0x1e8] sm:$0xf]
    %v151 = vld [vmem:[%s1 + $0x1ec] sm:$0xf]
    %v152 = vld [vmem:[%s1 + $0x1f0] sm:$0xf]
    %v153 = vld [vmem:[%s1 + $0x1f4] sm:$0xf]
    %v154 = vld [vmem:[%s1 + $0x1f8] sm:$0xf]
    %v155 = vld [vmem:[%s1 + $0x1fc] sm:$0xf]
    %v160 = vunpack.c.l.b16 %v24
    %v161 = vunpack.c.h.b16 %v24
    %v162 = vunpack.c.l.b16 %v25
    %v163 = vunpack.c.h.b16 %v25
    %v164 = vunpack.c.l.b16 %v26
    %v165 = vunpack.c.h.b16 %v26
    %v166 = vunpack.c.l.b16 %v27
    %v167 = vunpack.c.h.b16 %v27
    %v168 = vpack.c.b16 %v160, %v160
    %v169 = vpack.c.b16 %v161, %v161
    %v170 = vpack.c.b16 %v162, %v162
    %v171 = vpack.c.b16 %v163, %v163
    %v172 = vpack.c.b16 %v164, %v164
    %v173 = vpack.c.b16 %v165, %v165
    %v174 = vpack.c.b16 %v166, %v166
    %v175 = vpack.c.b16 %v167, %v167
    %v312 = vunpack.c.l.b16 %v28
    %v313 = vunpack.c.l.b16 %v29
    %v314 = vunpack.c.l.b16 %v30
    %v315 = vunpack.c.l.b16 %v31
    %v316 = vunpack.c.l.b16 %v32
    %v317 = vunpack.c.l.b16 %v33
    %v318 = vunpack.c.l.b16 %v34
    %v319 = vunpack.c.l.b16 %v35
    %v320 = vunpack.c.l.b16 %v36
    %v321 = vunpack.c.l.b16 %v37
    %v322 = vunpack.c.l.b16 %v38
    %v323 = vunpack.c.l.b16 %v39
    %v324 = vunpack.c.l.b16 %v40
    %v325 = vunpack.c.l.b16 %v41
    %v326 = vunpack.c.l.b16 %v42
    %v327 = vunpack.c.l.b16 %v43
    %v328 = vunpack.c.l.b16 %v44
    %v329 = vunpack.c.l.b16 %v45
    %v330 = vunpack.c.l.b16 %v46
    %v331 = vunpack.c.l.b16 %v47
    %v332 = vunpack.c.l.b16 %v48
    %v333 = vunpack.c.l.b16 %v49
    %v334 = vunpack.c.l.b16 %v50
    %v335 = vunpack.c.l.b16 %v51
    %v336 = vunpack.c.l.b16 %v52
    %v337 = vunpack.c.l.b16 %v53
    %v338 = vunpack.c.l.b16 %v54
    %v339 = vunpack.c.l.b16 %v55
    %v340 = vunpack.c.l.b16 %v56
    %v341 = vunpack.c.l.b16 %v57
    %v342 = vunpack.c.l.b16 %v58
    %v343 = vunpack.c.l.b16 %v59
    %v344 = vunpack.c.l.b16 %v60
    %v345 = vunpack.c.l.b16 %v61
    %v346 = vunpack.c.l.b16 %v62
    %v347 = vunpack.c.l.b16 %v63
    %v348 = vunpack.c.l.b16 %v64
    %v349 = vunpack.c.l.b16 %v65
    %v350 = vunpack.c.l.b16 %v66
    %v351 = vunpack.c.l.b16 %v67
    %v352 = vunpack.c.l.b16 %v68
    %v353 = vunpack.c.l.b16 %v69
    %v354 = vunpack.c.l.b16 %v70
    %v355 = vunpack.c.l.b16 %v71
    %v356 = vunpack.c.l.b16 %v72
    %v357 = vunpack.c.l.b16 %v73
    %v358 = vunpack.c.l.b16 %v74
    %v359 = vunpack.c.l.b16 %v75
    %v360 = vunpack.c.l.b16 %v76
    %v361 = vunpack.c.l.b16 %v77
    %v362 = vunpack.c.l.b16 %v78
    %v363 = vunpack.c.l.b16 %v79
    %v364 = vunpack.c.l.b16 %v80
    %v365 = vunpack.c.l.b16 %v81
    %v366 = vunpack.c.l.b16 %v82
    %v367 = vunpack.c.l.b16 %v83
    %v368 = vunpack.c.l.b16 %v84
    %v369 = vunpack.c.l.b16 %v85
    %v370 = vunpack.c.l.b16 %v86
    %v371 = vunpack.c.l.b16 %v87
    %v372 = vunpack.c.l.b16 %v88
    %v373 = vunpack.c.l.b16 %v89
    %v374 = vunpack.c.l.b16 %v90
    %v375 = vunpack.c.l.b16 %v91
    %v376 = vunpack.c.l.b16 %v92
    %v377 = vunpack.c.l.b16 %v93
    %v378 = vunpack.c.l.b16 %v94
    %v379 = vunpack.c.l.b16 %v95
    %v380 = vunpack.c.l.b16 %v96
    %v381 = vunpack.c.l.b16 %v97
    %v382 = vunpack.c.l.b16 %v98
    %v383 = vunpack.c.l.b16 %v99
    %v384 = vunpack.c.l.b16 %v100
    %v385 = vunpack.c.l.b16 %v101
    %v386 = vunpack.c.l.b16 %v102
    %v387 = vunpack.c.l.b16 %v103
    %v388 = vunpack.c.l.b16 %v104
    %v389 = vunpack.c.l.b16 %v105
    %v390 = vunpack.c.l.b16 %v106
    %v391 = vunpack.c.l.b16 %v107
    %v392 = vunpack.c.l.b16 %v108
    %v393 = vunpack.c.l.b16 %v109
    %v394 = vunpack.c.l.b16 %v110
    %v395 = vunpack.c.l.b16 %v111
    %v396 = vunpack.c.l.b16 %v112
    %v397 = vunpack.c.l.b16 %v113
    %v398 = vunpack.c.l.b16 %v114
    %v399 = vunpack.c.l.b16 %v115
    %v400 = vunpack.c.l.b16 %v116
    %v401 = vunpack.c.l.b16 %v117
    %v402 = vunpack.c.l.b16 %v118
    %v403 = vunpack.c.l.b16 %v119
    %v404 = vunpack.c.l.b16 %v120
    %v405 = vunpack.c.l.b16 %v121
    %v406 = vunpack.c.l.b16 %v122
    %v407 = vunpack.c.l.b16 %v123
    %v408 = vunpack.c.l.b16 %v124
    %v409 = vunpack.c.l.b16 %v125
    %v410 = vunpack.c.l.b16 %v126
    %v411 = vunpack.c.l.b16 %v127
    %v412 = vunpack.c.l.b16 %v128
    %v413 = vunpack.c.l.b16 %v129
    %v414 = vunpack.c.l.b16 %v130
    %v415 = vunpack.c.l.b16 %v131
    %v416 = vunpack.c.l.b16 %v132
    %v417 = vunpack.c.l.b16 %v133
    %v418 = vunpack.c.l.b16 %v134
    %v419 = vunpack.c.l.b16 %v135
    %v420 = vunpack.c.l.b16 %v136
    %v421 = vunpack.c.l.b16 %v137
    %v422 = vunpack.c.l.b16 %v138
    %v423 = vunpack.c.l.b16 %v139
    %v424 = vunpack.c.l.b16 %v140
    %v425 = vunpack.c.l.b16 %v141
    %v426 = vunpack.c.l.b16 %v142
    %v427 = vunpack.c.l.b16 %v143
    %v428 = vunpack.c.l.b16 %v144
    %v429 = vunpack.c.l.b16 %v145
    %v430 = vunpack.c.l.b16 %v146
    %v431 = vunpack.c.l.b16 %v147
    %v432 = vunpack.c.l.b16 %v148
    %v433 = vunpack.c.l.b16 %v149
    %v434 = vunpack.c.l.b16 %v150
    %v435 = vunpack.c.l.b16 %v151
    %v436 = vunpack.c.l.b16 %v152
    %v437 = vunpack.c.l.b16 %v153
    %v438 = vunpack.c.l.b16 %v154
    %v439 = vunpack.c.l.b16 %v155
    %v440 = vpack.c.b16 %v313, %v312
    %v441 = vpack.c.b16 %v315, %v314
    %v442 = vpack.c.b16 %v317, %v316
    %v443 = vpack.c.b16 %v319, %v318
    %v444 = vpack.c.b16 %v321, %v320
    %v445 = vpack.c.b16 %v323, %v322
    %v446 = vpack.c.b16 %v325, %v324
    %v447 = vpack.c.b16 %v327, %v326
    %v448 = vpack.c.b16 %v329, %v328
    %v449 = vpack.c.b16 %v331, %v330
    %v450 = vpack.c.b16 %v333, %v332
    %v451 = vpack.c.b16 %v335, %v334
    %v452 = vpack.c.b16 %v337, %v336
    %v453 = vpack.c.b16 %v339, %v338
    %v454 = vpack.c.b16 %v341, %v340
    %v455 = vpack.c.b16 %v343, %v342
    %v456 = vpack.c.b16 %v345, %v344
    %v457 = vpack.c.b16 %v347, %v346
    %v458 = vpack.c.b16 %v349, %v348
    %v459 = vpack.c.b16 %v351, %v350
    %v460 = vpack.c.b16 %v353, %v352
    %v461 = vpack.c.b16 %v355, %v354
    %v462 = vpack.c.b16 %v357, %v356
    %v463 = vpack.c.b16 %v359, %v358
    %v464 = vpack.c.b16 %v361, %v360
    %v465 = vpack.c.b16 %v363, %v362
    %v466 = vpack.c.b16 %v365, %v364
    %v467 = vpack.c.b16 %v367, %v366
    %v468 = vpack.c.b16 %v369, %v368
    %v469 = vpack.c.b16 %v371, %v370
    %v470 = vpack.c.b16 %v373, %v372
    %v471 = vpack.c.b16 %v375, %v374
    %v472 = vpack.c.b16 %v377, %v376
    %v473 = vpack.c.b16 %v379, %v378
    %v474 = vpack.c.b16 %v381, %v380
    %v475 = vpack.c.b16 %v383, %v382
    %v476 = vpack.c.b16 %v385, %v384
    %v477 = vpack.c.b16 %v387, %v386
    %v478 = vpack.c.b16 %v389, %v388
    %v479 = vpack.c.b16 %v391, %v390
    %v480 = vpack.c.b16 %v393, %v392
    %v481 = vpack.c.b16 %v395, %v394
    %v482 = vpack.c.b16 %v397, %v396
    %v483 = vpack.c.b16 %v399, %v398
    %v484 = vpack.c.b16 %v401, %v400
    %v485 = vpack.c.b16 %v403, %v402
    %v486 = vpack.c.b16 %v405, %v404
    %v487 = vpack.c.b16 %v407, %v406
    %v488 = vpack.c.b16 %v409, %v408
    %v489 = vpack.c.b16 %v411, %v410
    %v490 = vpack.c.b16 %v413, %v412
    %v491 = vpack.c.b16 %v415, %v414
    %v492 = vpack.c.b16 %v417, %v416
    %v493 = vpack.c.b16 %v419, %v418
    %v494 = vpack.c.b16 %v421, %v420
    %v495 = vpack.c.b16 %v423, %v422
    %v496 = vpack.c.b16 %v425, %v424
    %v497 = vpack.c.b16 %v427, %v426
    %v498 = vpack.c.b16 %v429, %v428
    %v499 = vpack.c.b16 %v431, %v430
    %v500 = vpack.c.b16 %v433, %v432
    %v501 = vpack.c.b16 %v435, %v434
    %v502 = vpack.c.b16 %v437, %v436
    %v503 = vpack.c.b16 %v439, %v438
    %568 = vmatprep.subr.bf16.mxu0 0
    %569 = vmatpush1.bf16.msra.mxu0 %v447
    %570 = vmatprep.subr.bf16.mxu0 0
    %571 = vmatpush1.bf16.msra.mxu0 %v446
    %572 = vmatprep.subr.bf16.mxu0 0
    %573 = vmatpush1.bf16.msra.mxu0 %v445
    %574 = vmatprep.subr.bf16.mxu0 0
    %575 = vmatpush1.bf16.msra.mxu0 %v444
    %576 = vmatprep.subr.bf16.mxu0 0
    %577 = vmatpush1.bf16.msra.mxu0 %v443
    %578 = vmatprep.subr.bf16.mxu0 0
    %579 = vmatpush1.bf16.msra.mxu0 %v442
    %580 = vmatprep.subr.bf16.mxu0 0
    %581 = vmatpush1.bf16.msra.mxu0 %v441
    %582 = vmatprep.subr.bf16.mxu0 0
    %583 = vmatpush1.bf16.msra.mxu0 %v440
    %584 = vmatprep.subr.bf16.mxu0 0
    %585 = vmatpush2.bf16.msra.mxu0 %v455
    %586 = vmatprep.subr.bf16.mxu0 0
    %587 = vmatpush2.bf16.msra.mxu0 %v454
    %588 = vmatprep.subr.bf16.mxu0 0
    %589 = vmatpush2.bf16.msra.mxu0 %v453
    %590 = vmatprep.subr.bf16.mxu0 0
    %591 = vmatpush2.bf16.msra.mxu0 %v452
    %592 = vmatprep.subr.bf16.mxu0 0
    %593 = vmatpush2.bf16.msra.mxu0 %v451
    %594 = vmatprep.subr.bf16.mxu0 0
    %595 = vmatpush2.bf16.msra.mxu0 %v450
    %596 = vmatprep.subr.bf16.mxu0 0
    %597 = vmatpush2.bf16.msra.mxu0 %v449
    %598 = vmatprep.subr.bf16.mxu0 0
    %599 = vmatpush2.bf16.msra.mxu0 %v448
    %600 = vmatprep.mubr.bf16.mxu0 %v169
    %601 = vmatmul.mubr.bf16.gmra.mxu0 %v168
    %v602 = vpop.f32.mrf.mxu0
    %v603 = vadd.f32 0.0, %v602
    %v604 = vpop.f32.mrf.mxu0
    %v605 = vpop.f32.mrf.mxu0
    %v606 = vpop.f32.mrf.mxu0
    %607 = vdwg.mxu0
    %608 = vmatprep.subr.bf16.mxu0 0
    %609 = vmatpush1.bf16.msra.mxu0 %v463
    %610 = vmatprep.subr.bf16.mxu0 0
    %611 = vmatpush1.bf16.msra.mxu0 %v462
    %612 = vmatprep.subr.bf16.mxu0 0
    %613 = vmatpush1.bf16.msra.mxu0 %v461
    %614 = vmatprep.subr.bf16.mxu0 0
    %615 = vmatpush1.bf16.msra.mxu0 %v460
    %616 = vmatprep.subr.bf16.mxu0 0
    %617 = vmatpush1.bf16.msra.mxu0 %v459
    %618 = vmatprep.subr.bf16.mxu0 0
    %619 = vmatpush1.bf16.msra.mxu0 %v458
    %620 = vmatprep.subr.bf16.mxu0 0
    %621 = vmatpush1.bf16.msra.mxu0 %v457
    %622 = vmatprep.subr.bf16.mxu0 0
    %623 = vmatpush1.bf16.msra.mxu0 %v456
    %624 = vmatprep.subr.bf16.mxu0 0
    %625 = vmatpush2.bf16.msra.mxu0 %v471
    %626 = vmatprep.subr.bf16.mxu0 0
    %627 = vmatpush2.bf16.msra.mxu0 %v470
    %628 = vmatprep.subr.bf16.mxu0 0
    %629 = vmatpush2.bf16.msra.mxu0 %v469
    %630 = vmatprep.subr.bf16.mxu0 0
    %631 = vmatpush2.bf16.msra.mxu0 %v468
    %632 = vmatprep.subr.bf16.mxu0 0
    %633 = vmatpush2.bf16.msra.mxu0 %v467
    %634 = vmatprep.subr.bf16.mxu0 0
    %635 = vmatpush2.bf16.msra.mxu0 %v466
    %636 = vmatprep.subr.bf16.mxu0 0
    %637 = vmatpush2.bf16.msra.mxu0 %v465
    %638 = vmatprep.subr.bf16.mxu0 0
    %639 = vmatpush2.bf16.msra.mxu0 %v464
    %640 = vmatprep.mubr.bf16.mxu0 %v171
    %641 = vmatmul.mubr.bf16.gmra.mxu0 %v170
    %v642 = vpop.f32.mrf.mxu0
    %v643 = vadd.f32 %v603, %v642
    %v644 = vpop.f32.mrf.mxu0
    %v645 = vpop.f32.mrf.mxu0
    %v646 = vpop.f32.mrf.mxu0
    %647 = vdwg.mxu0
    %648 = vmatprep.subr.bf16.mxu0 0
    %649 = vmatpush1.bf16.msra.mxu0 %v479
    %650 = vmatprep.subr.bf16.mxu0 0
    %651 = vmatpush1.bf16.msra.mxu0 %v478
    %652 = vmatprep.subr.bf16.mxu0 0
    %653 = vmatpush1.bf16.msra.mxu0 %v477
    %654 = vmatprep.subr.bf16.mxu0 0
    %655 = vmatpush1.bf16.msra.mxu0 %v476
    %656 = vmatprep.subr.bf16.mxu0 0
    %657 = vmatpush1.bf16.msra.mxu0 %v475
    %658 = vmatprep.subr.bf16.mxu0 0
    %659 = vmatpush1.bf16.msra.mxu0 %v474
    %660 = vmatprep.subr.bf16.mxu0 0
    %661 = vmatpush1.bf16.msra.mxu0 %v473
    %662 = vmatprep.subr.bf16.mxu0 0
    %663 = vmatpush1.bf16.msra.mxu0 %v472
    %664 = vmatprep.subr.bf16.mxu0 0
    %665 = vmatpush2.bf16.msra.mxu0 %v487
    %666 = vmatprep.subr.bf16.mxu0 0
    %667 = vmatpush2.bf16.msra.mxu0 %v486
    %668 = vmatprep.subr.bf16.mxu0 0
    %669 = vmatpush2.bf16.msra.mxu0 %v485
    %670 = vmatprep.subr.bf16.mxu0 0
    %671 = vmatpush2.bf16.msra.mxu0 %v484
    %672 = vmatprep.subr.bf16.mxu0 0
    %673 = vmatpush2.bf16.msra.mxu0 %v483
    %674 = vmatprep.subr.bf16.mxu0 0
    %675 = vmatpush2.bf16.msra.mxu0 %v482
    %676 = vmatprep.subr.bf16.mxu0 0
    %677 = vmatpush2.bf16.msra.mxu0 %v481
    %678 = vmatprep.subr.bf16.mxu0 0
    %679 = vmatpush2.bf16.msra.mxu0 %v480
    %680 = vmatprep.mubr.bf16.mxu0 %v173
    %681 = vmatmul.mubr.bf16.gmra.mxu0 %v172
    %v682 = vpop.f32.mrf.mxu0
    %v683 = vadd.f32 %v643, %v682
    %v684 = vpop.f32.mrf.mxu0
    %v685 = vpop.f32.mrf.mxu0
    %v686 = vpop.f32.mrf.mxu0
    %687 = vdwg.mxu0
    %688 = vmatprep.subr.bf16.mxu0 0
    %689 = vmatpush1.bf16.msra.mxu0 %v495
    %690 = vmatprep.subr.bf16.mxu0 0
    %691 = vmatpush1.bf16.msra.mxu0 %v494
    %692 = vmatprep.subr.bf16.mxu0 0
    %693 = vmatpush1.bf16.msra.mxu0 %v493
    %694 = vmatprep.subr.bf16.mxu0 0
    %695 = vmatpush1.bf16.msra.mxu0 %v492
    %696 = vmatprep.subr.bf16.mxu0 0
    %697 = vmatpush1.bf16.msra.mxu0 %v491
    %698 = vmatprep.subr.bf16.mxu0 0
    %699 = vmatpush1.bf16.msra.mxu0 %v490
    %700 = vmatprep.subr.bf16.mxu0 0
    %701 = vmatpush1.bf16.msra.mxu0 %v489
    %702 = vmatprep.subr.bf16.mxu0 0
    %703 = vmatpush1.bf16.msra.mxu0 %v488
    %704 = vmatprep.subr.bf16.mxu0 0
    %705 = vmatpush2.bf16.msra.mxu0 %v503
    %706 = vmatprep.subr.bf16.mxu0 0
    %707 = vmatpush2.bf16.msra.mxu0 %v502
    %708 = vmatprep.subr.bf16.mxu0 0
    %709 = vmatpush2.bf16.msra.mxu0 %v501
    %710 = vmatprep.subr.bf16.mxu0 0
    %711 = vmatpush2.bf16.msra.mxu0 %v500
    %712 = vmatprep.subr.bf16.mxu0 0
    %713 = vmatpush2.bf16.msra.mxu0 %v499
    %714 = vmatprep.subr.bf16.mxu0 0
    %715 = vmatpush2.bf16.msra.mxu0 %v498
    %716 = vmatprep.subr.bf16.mxu0 0
    %717 = vmatpush2.bf16.msra.mxu0 %v497
    %718 = vmatprep.subr.bf16.mxu0 0
    %719 = vmatpush2.bf16.msra.mxu0 %v496
    %720 = vmatprep.mubr.bf16.mxu0 %v175
    %721 = vmatmul.mubr.bf16.gmra.mxu0 %v174
    %v722 = vpop.f32.mrf.mxu0
    %v723 = vadd.f32 %v683, %v722
    %v724 = vpop.f32.mrf.mxu0
    %v725 = vpop.f32.mrf.mxu0
    %v726 = vpop.f32.mrf.mxu0
    %727 = vdwg.mxu0
    %v728 = vadd.f32 %v23, %v723
    %vm729 = vcmask 261120
    %730 = vst.msk [vmem:[#allocation2] sm:$0xff] %vm729, %v728
    // Predicated region
    $region18: #{tpu_custom_call.1} parent=1 // pred_check
      _
    $region19: #{tpu_custom_call.1} parent=1 // pred_check_branch
      %732 = sbr.rel (0) target = $region21
    $region20: #{tpu_custom_call.1} parent=1 // pred_region
      %s734 = ssub.s32 128, 128
      %735 = vsyncadd [#allocation3], %s734
      %s737 = sshll.u32 [#allocation2], 4
      %s738 = int_to_ptr.vmem [resolvable:$true] %s737
      %740 = dma.vmem_to_hbm [thread:$0]  %s738, 128, %s3, [#allocation3]
    $region21: #{tpu_custom_call.1} parent=1 // pred_fallthru
      _
    // Predicated region
    $region22: #{tpu_custom_call.1} parent=1 // pred_check
      _
    $region23: #{tpu_custom_call.1} parent=1 // pred_check_branch
      %742 = sbr.rel (0) target = $region25
    $region24: #{tpu_custom_call.1} parent=1 // pred_region
      %743 = dma.done [#allocation3], 128
    $region25: #{tpu_custom_call.1} parent=1 // pred_fallthru
      _
    %744 = vsyncpa [#allocation3], 1

</llo_original>
